<compile_context>
chip_gen: v6e
topology: v6e:2x2x1
jax: 0.10.0
libtpu: 0.0.40
codegen_flags: <defaults>
</compile_context>

<pallas_src>
import functools

import jax
import jax.numpy as jnp
import numpy as np
from jax.experimental import pallas as pl
from jax.experimental.pallas import tpu as pltpu

NCLS = 4                       # number of segmentation classes
MAX_PIX_TILE = 32768           # pixels (lanes) per grid step, multiple of 128
_MXU_MIN_CIN = 16              # use the MXU for the 1x1 head at large CIN
VMEM_LIMIT_BYTES = 48 * 1024 * 1024   # > v5e 16 MiB scoped default, < v7x 64 MiB


def _pixel_tile(hw, max_tile=MAX_PIX_TILE):
    # Block's last dim must be a multiple of 128 OR the full extent.
    if hw <= max_tile:
        return hw
    return max_tile                      # max_tile is a multiple of 128


def _split_pixel_grid(n_tiles, n_cores=2):
    # Give v7x's two TensorCores a 'parallel' pixel axis when batch is small.
    # Only split when it divides evenly so no grid step maps out of range.
    if n_tiles >= n_cores and n_tiles % n_cores == 0:
        return n_cores, n_tiles // n_cores
    return 1, n_tiles


# ----------------------------- kernel helpers ------------------------------ #

def _head_logits(x, wt, b):
    """Synthetic unet 1x1-conv head.

    x: (CIN, T) f32 pixel slab, wt: (NCLS, CIN) f32, b: (NCLS, 1) f32.
    Returns logits, shape (NCLS, T) f32.
    """
    ncls, cin = wt.shape
    if cin >= _MXU_MIN_CIN:
        # Realistic channel counts: one MXU matmul instead of a serial VALU
        # FMA chain of length CIN.
        return jax.lax.dot_general(
            wt, x, (((1,), (0,)), ((), ())),
            preferred_element_type=jnp.float32) + b
    # Tiny CIN (==4 here): broadcast FMAs on the VPU, MXU is overkill.
    logits = wt[:, 0:1] * x[0:1, :]
    for c in range(1, cin):
        logits = logits + wt[:, c:c + 1] * x[c:c + 1, :]
    return logits + b


# ------------------------------- kernels ----------------------------------- #

def pred_kernel(x_ref, wt_ref, b_ref, out_ref):
    # segSize=True branch: softmax(unet(image)[0], dim=1)
    logits = _head_logits(x_ref[0].astype(jnp.float32), wt_ref[...], b_ref[...])
    m = jnp.max(logits, axis=0, keepdims=True)
    e = jnp.exp(logits - m)
    s = jnp.sum(e, axis=0, keepdims=True)
    prob = e * pl.reciprocal(s, approx=True)     # EUP reciprocal, frees VALU
    out_ref[0] = prob.astype(out_ref.dtype)      # f32 compute, bf16 store


def fused_acc_kernel(x_ref, lab_ref, wt_ref, b_ref, stats_ref, *,
                     hw, tile, n_inner):
    """Training branch: head + pixel_acc statistics, no pred writeback.

    stats block (resident across the inner pixel axis), shape (1, 3, NCLS, T):
      plane 0: A -- row 0 = valid & (pred == label), rows k>=1 = (label==k & pred==k)
      plane 1: V -- row 0 = valid (label >= 1),      rows k>=1 = (label==k)
      plane 2: P -- rows k = (pred == k)
    """
    logits = _head_logits(x_ref[0].astype(jnp.float32), wt_ref[...], b_ref[...])
    ncls = logits.shape[0]

    m = jnp.max(logits, axis=0, keepdims=True)                     # shared max
    s = jnp.sum(jnp.exp(logits - m), axis=0, keepdims=True)        # 1/s = max prob

    cls_iota = jax.lax.broadcasted_iota(jnp.int32, logits.shape, 0)  # (NCLS, T)
    argmax = jnp.min(jnp.where(logits == m, cls_iota, ncls),
                     axis=0, keepdims=True)                          # first max idx
    # torch.max(round(softmax)) semantics: if max prob < 0.5 every rounded row
    # is 0 and torch.max returns class 0;  max_prob >= 0.5  <=>  s <= 2.
    preds = jnp.where(s <= 2.0, argmax, 0)                           # (1, T) int32

    # Fold the padded-tail mask ONCE into sentinels (no per-row mask multiplies).
    oi = pl.program_id(1)
    ii = pl.program_id(2)
    gidx = (oi * n_inner + ii) * tile + jax.lax.broadcasted_iota(
        jnp.int32, preds.shape, 1)
    inb = gidx < hw
    lab = jnp.where(inb, lab_ref[0].astype(jnp.int32), -1)          # (1, T)
    preds = jnp.where(inb, preds, -1)

    oh_l = lab == cls_iota                                           # (NCLS, T) bool
    oh_p = preds == cls_iota                                         # (NCLS, T) bool
    row0 = cls_iota == 0
    # Row 0 of the A / V slabs carries the global (valid & correct) / valid
    # counts so labels >= NCLS are still counted exactly like the reference.
    a_slab = jnp.where(row0, (lab >= 1) & (preds == lab), oh_l & oh_p)
    v_slab = jnp.where(row0, lab >= 1, oh_l)

    @pl.when(ii == 0)
    def _():
        stats_ref[...] = jnp.zeros_like(stats_ref)

    stats_ref[0, 0] = stats_ref[0, 0] + a_slab.astype(jnp.float32)
    stats_ref[0, 1] = stats_ref[0, 1] + v_slab.astype(jnp.float32)
    stats_ref[0, 2] = stats_ref[0, 2] + oh_p.astype(jnp.float32)


# ------------------------------- wrappers ----------------------------------- #

def unet_softmax(image, w, b, *, max_tile=MAX_PIX_TILE, pred_dtype=jnp.bfloat16):
    """softmax(unet(image)[0], dim=1); NCHW in / NCHW out, no HBM transposes."""
    bsz, cin, h, wd = image.shape
    hw = h * wd
    ncls = w.shape[1]
    tile = _pixel_tile(hw, max_tile)
    n_tiles = pl.cdiv(hw, tile)

    x = image.reshape(bsz, cin, hw)
    wt = jnp.transpose(w).astype(jnp.float32)        # (NCLS, CIN), tiny
    b2 = b.reshape(ncls, 1).astype(jnp.float32)

    out = pl.pallas_call(
        pred_kernel,
        out_shape=jax.ShapeDtypeStruct((bsz, ncls, hw), pred_dtype),
        grid=(bsz, n_tiles),
        in_specs=[
            pl.BlockSpec((1, cin, tile), lambda bi, i: (bi, 0, i)),
            pl.BlockSpec((ncls, cin), lambda bi, i: (0, 0)),
            pl.BlockSpec((ncls, 1), lambda bi, i: (0, 0)),
        ],
        out_specs=pl.BlockSpec((1, ncls, tile), lambda bi, i: (bi, 0, i)),
        compiler_params=pltpu.CompilerParams(
            dimension_semantics=("parallel", "parallel"),
            vmem_limit_bytes=VMEM_LIMIT_BYTES),
    )(x, wt, b2)
    return out.reshape(bsz, ncls, h, wd)


def unet_pixel_acc(image, mask, w, b, *, max_tile=MAX_PIX_TILE):
    """Fused head + SegmentationModuleBase.pixel_acc statistics (no pred out)."""
    bsz, cin, h, wd = image.shape
    hw = h * wd
    ncls = w.shape[1]
    tile = _pixel_tile(hw, max_tile)
    n_tiles = pl.cdiv(hw, tile)
    n_outer, n_inner = _split_pixel_grid(n_tiles)

    x = image.reshape(bsz, cin, hw)
    # Keep the mask in its (narrow) upstream dtype -- widened in-kernel.
    lab = mask.reshape(bsz, 1, hw)
    if not jnp.issubdtype(lab.dtype, jnp.integer):
        lab = lab.astype(jnp.int32)
    wt = jnp.transpose(w).astype(jnp.float32)
    b2 = b.reshape(ncls, 1).astype(jnp.float32)

    kernel = functools.partial(fused_acc_kernel, hw=hw, tile=tile,
                               n_inner=n_inner)
    stats = pl.pallas_call(
        kernel,
        out_shape=jax.ShapeDtypeStruct((bsz * n_outer, 3, ncls, tile),
                                       jnp.float32),
        grid=(bsz, n_outer, n_inner),
        in_specs=[
            pl.BlockSpec((1, cin, tile),
                         lambda bi, oi, ii: (bi, 0, oi * n_inner + ii)),
            pl.BlockSpec((1, 1, tile),
                         lambda bi, oi, ii: (bi, 0, oi * n_inner + ii)),
            pl.BlockSpec((ncls, cin), lambda bi, oi, ii: (0, 0)),
            pl.BlockSpec((ncls, 1), lambda bi, oi, ii: (0, 0)),
        ],
        out_specs=pl.BlockSpec((1, 3, ncls, tile),
                               lambda bi, oi, ii: (bi * n_outer + oi, 0, 0, 0)),
        compiler_params=pltpu.CompilerParams(
            dimension_semantics=("parallel", "parallel", "arbitrary"),
            vmem_limit_bytes=VMEM_LIMIT_BYTES),
    )(x, lab, wt, b2)

    # Tiny epilogue: reduce (batch*outer, lanes) -> (3, NCLS) scalars.
    s = jnp.sum(stats, axis=(0, 3))
    a, v, p = s[0], s[1], s[2]
    acc = a[0] / (v[0] + 1e-10)
    jac = []
    for k in (1, 2, 3):
        j = a[k] / (v[k] + p[k] - a[k] + 1e-10)
        jac.append(jnp.where(j > 1.0, 0.0, j))     # "j if j <= 1 else 0"
    return acc, jac


def segmentation_module_forward(feed_dict, epoch, params, *, segSize=None,
                                max_tile=MAX_PIX_TILE,
                                pred_dtype=jnp.bfloat16):
    image = feed_dict["image"]
    w, bias = params
    if segSize is None:
        # Training branch: returns (loss, (acc, jaccard)).
        acc = unet_pixel_acc(image, feed_dict["mask"], w, bias,
                             max_tile=max_tile)
        # TODO(synk): self.crit is an external loss module (not defined in the
        # reference); the loss term is omitted here.
        loss = None
        return loss, acc
    if segSize is True:
        # pred = softmax(unet(image)[0], dim=1)
        return unet_softmax(image, w, bias, max_tile=max_tile,
                            pred_dtype=pred_dtype)
    # TODO(synk): this branch calls self.crit on a two-head unet output; only
    # the softmax prediction is produced here.
    pred = unet_softmax(image, w, bias, max_tile=max_tile,
                        pred_dtype=pred_dtype)
    return pred, None


# --------------------------------- main ------------------------------------- #

def _run_checks(key, B, CIN, H, W, *, max_tile, image_dtype, mask_dtype,
                pred_dtype, pred_atol):
    k1, k2, k3, k4 = jax.random.split(key, 4)
    image = jax.random.normal(k1, (B, CIN, H, W), jnp.float32).astype(image_dtype)
    mask_i32 = jax.random.randint(k2, (B, H, W), 0, NCLS, dtype=jnp.int32)
    mask = mask_i32.astype(mask_dtype)
    w = jax.random.normal(k3, (CIN, NCLS), jnp.float32) * 0.5
    b = jax.random.normal(k4, (NCLS,), jnp.float32) * 0.1
    feed = {"image": image, "mask": mask}

    # segSize=True branch.
    pred = segmentation_module_forward(feed, epoch=0, params=(w, b),
                                       segSize=True, max_tile=max_tile,
                                       pred_dtype=pred_dtype)
    pred = jax.block_until_ready(pred)

    # Training branch: (loss, (acc, jaccard)).
    _loss, (acc, jac) = segmentation_module_forward(feed, epoch=0,
                                                    params=(w, b),
                                                    segSize=None,
                                                    max_tile=max_tile)
    acc = jax.block_until_ready(acc)
    jac = [jax.block_until_ready(j) for j in jac]

    # --- pure-JAX reference ---
    img_f32 = image.astype(jnp.float32)
    logits_ref = jnp.einsum("bchw,ck->bkhw", img_f32, w) + b[None, :, None, None]
    prob_ref = jax.nn.softmax(logits_ref, axis=1)
    np.testing.assert_allclose(np.asarray(pred.astype(jnp.float32)),
                               np.asarray(prob_ref), atol=pred_atol)

    # torch.max(torch.round(softmax)) semantics: max prob < 0.5 -> class 0.
    preds_cls = jnp.where(jnp.max(prob_ref, axis=1) >= 0.5,
                          jnp.argmax(prob_ref, axis=1), 0)
    lab = mask_i32
    valid = (lab >= 1).astype(jnp.float32)
    acc_ref = jnp.sum(valid * (preds_cls == lab).astype(jnp.float32)) / (
        jnp.sum(valid) + 1e-10)
    assert abs(float(acc) - float(acc_ref)) < 1e-5
    for k in range(1, NCLS):
        vk = (lab == k).astype(jnp.float32)
        pk = (preds_cls == k).astype(jnp.float32)
        anb = jnp.sum(vk * pk)
        j_ref = anb / (jnp.sum(vk) + jnp.sum(pk) - anb + 1e-10)
        j_ref = jnp.where(j_ref > 1.0, 0.0, j_ref)
        assert abs(float(jac[k - 1]) - float(j_ref)) < 1e-5


if __name__ == "__main__":
    key = jax.random.PRNGKey(0)
    k_a, k_b = jax.random.split(key)
    # Single-tile case: f32 image / int32 mask / f32 pred (tight check).
    _run_checks(k_a, B=2, CIN=4, H=16, W=16, max_tile=MAX_PIX_TILE,
                image_dtype=jnp.float32, mask_dtype=jnp.int32,
                pred_dtype=jnp.float32, pred_atol=5e-3)
    # Multi-tile + masked tail + 2-way pixel split: bf16 image / int8 mask /
    # bf16 pred (exercises the narrow-dtype HBM path).
    _run_checks(k_b, B=2, CIN=4, H=16, W=24, max_tile=256,
                image_dtype=jnp.bfloat16, mask_dtype=jnp.int8,
                pred_dtype=jnp.bfloat16, pred_atol=2e-2)
    print("KERNEL_OK")
</pallas_src>

<mosaic_0001>
module attributes {stable_mosaic.version = 11 : i64} {
  func.func @pred_kernel(%arg0: i32, %arg1: i32, %arg2: memref<1x4x256xf32, #tpu.memory_space<vmem>>, %arg3: memref<4x4xf32, #tpu.memory_space<vmem>>, %arg4: memref<4x1xf32, #tpu.memory_space<vmem>>, %arg5: memref<1x4x256xf32, #tpu.memory_space<vmem>>) attributes {dimension_semantics = [#tpu.dimension_semantics<parallel>, #tpu.dimension_semantics<parallel>], iteration_bounds = array<i64: 2, 1>, scalar_prefetch = 0 : i64, scratch_operands = 0 : i64, tpu.core_type = #tpu.core_type<tc>, window_params = [{transform_indices = @transform_0, window_bounds = array<i64: 1, 4, 256>}, {pipeline_mode = #tpu.pipeline_mode<synchronous>, transform_indices = @transform_1, window_bounds = array<i64: 4, 4>}, {pipeline_mode = #tpu.pipeline_mode<synchronous>, transform_indices = @transform_2, window_bounds = array<i64: 4, 1>}, {transform_indices = @transform_3, window_bounds = array<i64: 1, 4, 256>}]} {
    %c0 = arith.constant 0 : index
    %c0_0 = arith.constant 0 : index
    %c0_1 = arith.constant 0 : index
    %0 = vector.load %arg2[%c0, %c0_0, %c0_1] : memref<1x4x256xf32, #tpu.memory_space<vmem>>, vector<1x4x256xf32>
    %1 = vector.shape_cast %0 : vector<1x4x256xf32> to vector<4x256xf32>
    %c0_2 = arith.constant 0 : index
    %c0_3 = arith.constant 0 : index
    %2 = vector.load %arg3[%c0_2, %c0_3] : memref<4x4xf32, #tpu.memory_space<vmem>>, vector<4x4xf32>
    %c0_4 = arith.constant 0 : index
    %c0_5 = arith.constant 0 : index
    %3 = vector.load %arg4[%c0_4, %c0_5] : memref<4x1xf32, #tpu.memory_space<vmem>>, vector<4x1xf32>
    %4 = vector.extract_strided_slice %2 {offsets = [0, 0], sizes = [4, 1], strides = [1, 1]} : vector<4x4xf32> to vector<4x1xf32>
    %5 = vector.extract_strided_slice %1 {offsets = [0, 0], sizes = [1, 256], strides = [1, 1]} : vector<4x256xf32> to vector<1x256xf32>
    %6 = vector.broadcast %4 : vector<4x1xf32> to vector<4x256xf32>
    %7 = vector.broadcast %5 : vector<1x256xf32> to vector<4x256xf32>
    %8 = arith.mulf %6, %7 : vector<4x256xf32>
    %9 = vector.extract_strided_slice %2 {offsets = [0, 1], sizes = [4, 1], strides = [1, 1]} : vector<4x4xf32> to vector<4x1xf32>
    %10 = vector.extract_strided_slice %1 {offsets = [1, 0], sizes = [1, 256], strides = [1, 1]} : vector<4x256xf32> to vector<1x256xf32>
    %11 = vector.broadcast %9 : vector<4x1xf32> to vector<4x256xf32>
    %12 = vector.broadcast %10 : vector<1x256xf32> to vector<4x256xf32>
    %13 = arith.mulf %11, %12 : vector<4x256xf32>
    %14 = arith.addf %8, %13 : vector<4x256xf32>
    %15 = vector.extract_strided_slice %2 {offsets = [0, 2], sizes = [4, 1], strides = [1, 1]} : vector<4x4xf32> to vector<4x1xf32>
    %16 = vector.extract_strided_slice %1 {offsets = [2, 0], sizes = [1, 256], strides = [1, 1]} : vector<4x256xf32> to vector<1x256xf32>
    %17 = vector.broadcast %15 : vector<4x1xf32> to vector<4x256xf32>
    %18 = vector.broadcast %16 : vector<1x256xf32> to vector<4x256xf32>
    %19 = arith.mulf %17, %18 : vector<4x256xf32>
    %20 = arith.addf %14, %19 : vector<4x256xf32>
    %21 = vector.extract_strided_slice %2 {offsets = [0, 3], sizes = [4, 1], strides = [1, 1]} : vector<4x4xf32> to vector<4x1xf32>
    %22 = vector.extract_strided_slice %1 {offsets = [3, 0], sizes = [1, 256], strides = [1, 1]} : vector<4x256xf32> to vector<1x256xf32>
    %23 = vector.broadcast %21 : vector<4x1xf32> to vector<4x256xf32>
    %24 = vector.broadcast %22 : vector<1x256xf32> to vector<4x256xf32>
    %25 = arith.mulf %23, %24 : vector<4x256xf32>
    %26 = arith.addf %20, %25 : vector<4x256xf32>
    %27 = vector.broadcast %3 : vector<4x1xf32> to vector<4x256xf32>
    %28 = arith.addf %26, %27 : vector<4x256xf32>
    %cst = arith.constant dense<0xFF800000> : vector<256xf32>
    %29 = vector.multi_reduction <maximumf>, %28, %cst [0] : vector<4x256xf32> to vector<256xf32>
    %30 = vector.shape_cast %29 : vector<256xf32> to vector<1x256xf32>
    %31 = vector.broadcast %30 : vector<1x256xf32> to vector<4x256xf32>
    %32 = arith.subf %28, %31 : vector<4x256xf32>
    %33 = math.exp %32 : vector<4x256xf32>
    %cst_6 = arith.constant dense<0.000000e+00> : vector<256xf32>
    %34 = vector.multi_reduction <add>, %33, %cst_6 [0] : vector<4x256xf32> to vector<256xf32>
    %35 = vector.shape_cast %34 : vector<256xf32> to vector<1x256xf32>
    %36 = tpu.reciprocal %35 {approx = true} : vector<1x256xf32> -> vector<1x256xf32>
    %37 = vector.broadcast %36 : vector<1x256xf32> to vector<4x256xf32>
    %38 = arith.mulf %33, %37 : vector<4x256xf32>
    %c0_7 = arith.constant 0 : index
    %c0_8 = arith.constant 0 : index
    %c0_9 = arith.constant 0 : index
    %39 = vector.load %arg5[%c0_7, %c0_8, %c0_9] : memref<1x4x256xf32, #tpu.memory_space<vmem>>, vector<1x4x256xf32>
    %40 = vector.shape_cast %39 : vector<1x4x256xf32> to vector<4x256xf32>
    %41 = vector.shape_cast %38 : vector<4x256xf32> to vector<1x4x256xf32>
    tpu.vector_store %arg5[%c0_7, %c0_8, %c0_9], %41 {strides = array<i32>} : memref<1x4x256xf32, #tpu.memory_space<vmem>>, vector<1x4x256xf32>,
    return
  }
  func.func @transform_0(%arg0: i32, %arg1: i32) -> (i32, i32, i32) {
    %c0_i32 = arith.constant 0 : i32
    %c0_i32_0 = arith.constant 0 : i32
    return %arg0, %c0_i32, %arg1 : i32, i32, i32
  }
  func.func @transform_1(%arg0: i32, %arg1: i32) -> (i32, i32) {
    %c0_i32 = arith.constant 0 : i32
    %c0_i32_0 = arith.constant 0 : i32
    %c0_i32_1 = arith.constant 0 : i32
    return %c0_i32, %c0_i32_0 : i32, i32
  }
  func.func @transform_2(%arg0: i32, %arg1: i32) -> (i32, i32) {
    %c0_i32 = arith.constant 0 : i32
    %c0_i32_0 = arith.constant 0 : i32
    %c0_i32_1 = arith.constant 0 : i32
    return %c0_i32, %c0_i32_0 : i32, i32
  }
  func.func @transform_3(%arg0: i32, %arg1: i32) -> (i32, i32, i32) {
    %c0_i32 = arith.constant 0 : i32
    %c0_i32_0 = arith.constant 0 : i32
    return %arg0, %c0_i32, %arg1 : i32, i32, i32
  }
}

</mosaic_0001>

<llo_original>
// kernel: tpu_custom_call.1
$region0: #{tpu_custom_call.1}
  #allocation0 [shape = 'u32[]', space=smem, size = 0x4, offset = 0x4, fixed_abs, tag = 'smem constant byte address 0x4 - core index']
  #allocation1 [shape = 'u32[144,128]{1,0:T(1,128)}', space=vmem, size = 0x12000, scoped, tag = 'internal scratch']
  %s0 = inlined_call_operand.hbm [shape: f32[2,4,256], index: 0, kind: input, shape index: {}]
  %s1 = inlined_call_operand.vmem [shape: f32[4,4], index: 1, kind: input, shape index: {}]
  %s2 = inlined_call_operand.vmem [shape: f32[4,1], index: 2, kind: input, shape index: {}]
  %s3 = inlined_call_operand.hbm [shape: f32[2,4,256], index: 3, kind: output, shape index: {}]
  %s4 = sld [smem:[#allocation0]]
  $region49: #{tpu_custom_call.1} parent=0
    _
  %s6 = ssub.s32 1, %s4
  %s7 = scalar_select 0, %s6, %s4
  $region1: #{tpu_custom_call.1} parent=0
    #allocation2 [shape = 'u8[8192]{0}', space=vmem, size = 0x2000, scoped, tag = 'input window, operand 0']
    #allocation3 [shape = 's32[2]{0}', space=sflag, size = 0x8, scoped, tag = 'scoped memory for tpu_custom_call.1']
    #allocation4 [shape = 's32[2]{0}', space=sflag, size = 0x8, scoped, tag = 'scoped memory for tpu_custom_call.1']
    #allocation5 [shape = 'u8[8192]{0}', space=vmem, size = 0x2000, scoped, tag = 'output window, operand 0']
    %8 = vsyncpa [#allocation3], 0
    %s9 = scalar_lea.sflag [#allocation3], 1
    %10 = vsyncpa %s9, 0
    %11 = vsyncpa [#allocation4], 0
    %s12 = scalar_lea.sflag [#allocation4], 1
    %13 = vsyncpa %s12, 0
    loop: start=0, step=1, limit=4
    $region2: #{tpu_custom_call.1} parent=1 // loop_pre_header
      _
    $region3: #{tpu_custom_call.1} parent=1 // loop_header
      %s15 = sphi 0, %s19
      %p16 = scmp.ge.s32.totalorder %s15, 4
      %s22 = sphi 0, %s34
      %s23 = sphi 0, %s30
      %s24 = sphi 0, %s22
      %s25 = sphi 0, %s23
      %s26 = sphi 0, %s24
      %s27 = sphi 0, %s25
      %s39 = sphi 0, %s41
      %s42 = sphi 0, %s39
      %s43 = sphi 0, %s42
      %s59 = sphi 0, %s43
      %s63 = sphi 0, %s63
      %s65 = sphi 0, %s63
      %s66 = sphi 0, %s65
      %s80 = sphi 0, %s66
      %s84 = sphi 0, %s84
      %s86 = sphi 0, %s84
      %s87 = sphi 0, %s86
      %s101 = sphi 0, %s87
      %s109 = sphi 0, %s111
      %s112 = sphi 0, %s109
      %s113 = sphi 0, %s112
      %s129 = sphi 0, %s113
    $region4: #{tpu_custom_call.1} parent=1 // loop_header_branch
      %18 = sbr.rel (%p16) target = $region8
    $region5: #{tpu_custom_call.1} parent=1 // loop_body
      %s20 = ssub.s32 %s15, 1
      %s21 = ssub.s32 %s15, 2
      %s28 = sadd.s32 1, %s23
      %p29 = scmp.ge.s32.totalorder %s28, 1
      %s30 = scalar_select %p29, 0, %s28
      %s31 = sadd.s32 1, %s22
      %s32 = scalar_select %p29, %s31, %s22
      %p33 = scmp.ge.s32.totalorder %s32, 2
      %s34 = scalar_select %p33, 0, %s32
      %s35 = ssub.s32 %s22, %s34
      %s36 = ssub.s32 %s23, %s30
      %s37 = sor.u32 %s35, %s36
      %p38 = scmp.eq.s32.totalorder %s37, 0
      %s40 = sadd.s32 %s39, 1
      %s41 = scalar_select %p38, %s39, %s40
      %p44 = pneg %p38
      %p45 = scmp.eq.s32.totalorder %s15, 1
      %p46 = por %p44, %p45
      %p47 = scmp.ne.s32.totalorder %s39, %s42
      %p48 = scmp.eq.s32.totalorder %s15, 0
      %p49 = por %p47, %p48
      %p50 = scmp.ne.s32.totalorder %s39, %s42
      %p51 = scmp.eq.s32.totalorder %s20, 1
      %p52 = por %p50, %p51
      %p53 = scmp.ne.s32.totalorder %s42, %s43
      %p54 = scmp.eq.s32.totalorder %s20, 0
      %p55 = por %p53, %p54
      %p56 = scmp.ne.s32.totalorder %s42, %s43
      %p57 = scmp.eq.s32.totalorder %s21, 1
      %p58 = por %p56, %p57
      %p60 = scmp.ne.s32.totalorder %s43, %s59
      %p61 = scmp.eq.s32.totalorder %s21, 0
      %p62 = por %p60, %p61
      %s64 = sadd.s32 %s63, 1
      %p67 = scmp.eq.s32.totalorder %s15, 1
      %p68 = scmp.ne.s32.totalorder %s63, %s65
      %p69 = scmp.eq.s32.totalorder %s15, 0
      %p70 = por %p68, %p69
      %p71 = scmp.ne.s32.totalorder %s63, %s65
      %p72 = scmp.eq.s32.totalorder %s20, 1
      %p73 = por %p71, %p72
      %p74 = scmp.ne.s32.totalorder %s65, %s66
      %p75 = scmp.eq.s32.totalorder %s20, 0
      %p76 = por %p74, %p75
      %p77 = scmp.ne.s32.totalorder %s65, %s66
      %p78 = scmp.eq.s32.totalorder %s21, 1
      %p79 = por %p77, %p78
      %p81 = scmp.ne.s32.totalorder %s66, %s80
      %p82 = scmp.eq.s32.totalorder %s21, 0
      %p83 = por %p81, %p82
      %s85 = sadd.s32 %s84, 1
      %p88 = scmp.eq.s32.totalorder %s15, 1
      %p89 = scmp.ne.s32.totalorder %s84, %s86
      %p90 = scmp.eq.s32.totalorder %s15, 0
      %p91 = por %p89, %p90
      %p92 = scmp.ne.s32.totalorder %s84, %s86
      %p93 = scmp.eq.s32.totalorder %s20, 1
      %p94 = por %p92, %p93
      %p95 = scmp.ne.s32.totalorder %s86, %s87
      %p96 = scmp.eq.s32.totalorder %s20, 0
      %p97 = por %p95, %p96
      %p98 = scmp.ne.s32.totalorder %s86, %s87
      %p99 = scmp.eq.s32.totalorder %s21, 1
      %p100 = por %p98, %p99
      %p102 = scmp.ne.s32.totalorder %s87, %s101
      %p103 = scmp.eq.s32.totalorder %s21, 0
      %p104 = por %p102, %p103
      %s105 = ssub.s32 %s22, %s34
      %s106 = ssub.s32 %s23, %s30
      %s107 = sor.u32 %s105, %s106
      %p108 = scmp.eq.s32.totalorder %s107, 0
      %s110 = sadd.s32 %s109, 1
      %s111 = scalar_select %p108, %s109, %s110
      %p114 = pneg %p108
      %p115 = scmp.eq.s32.totalorder %s15, 1
      %p116 = por %p114, %p115
      %p117 = scmp.ne.s32.totalorder %s109, %s112
      %p118 = scmp.eq.s32.totalorder %s15, 0
      %p119 = por %p117, %p118
      %p120 = scmp.ne.s32.totalorder %s109, %s112
      %p121 = scmp.eq.s32.totalorder %s20, 1
      %p122 = por %p120, %p121
      %p123 = scmp.ne.s32.totalorder %s112, %s113
      %p124 = scmp.eq.s32.totalorder %s20, 0
      %p125 = por %p123, %p124
      %p126 = scmp.ne.s32.totalorder %s112, %s113
      %p127 = scmp.eq.s32.totalorder %s21, 1
      %p128 = por %p126, %p127
      %p130 = scmp.ne.s32.totalorder %s113, %s129
      %p131 = scmp.eq.s32.totalorder %s21, 0
      %p132 = por %p130, %p131
      %p133 = scmp.le.s32.totalorder 1, %s15
      %p134 = scmp.lt.s32.totalorder %s15, 3
      %p135 = pnand %p133, %p134
      %p136 = pneg %p135
      // Predicated region
      $region9: #{tpu_custom_call.1} parent=5 // pred_check
        _
      $region10: #{tpu_custom_call.1} parent=5 // pred_check_branch
        %138 = sbr.rel (%p135) target = $region12
      $region11: #{tpu_custom_call.1} parent=5 // pred_region
        %s139 = ssub.s32 %s15, 1
        // Predicated region
        $region13: #{tpu_custom_call.1} parent=11 // pred_check
          %p140 = pneg %p76
        $region14: #{tpu_custom_call.1} parent=11 // pred_check_branch
          %142 = sbr.rel (%p140) target = $region16
        $region15: #{tpu_custom_call.1} parent=11 // pred_region
          _
        $region16: #{tpu_custom_call.1} parent=11 // pred_fallthru
          _
        // Predicated region
        $region17: #{tpu_custom_call.1} parent=11 // pred_check
          %p143 = pneg %p97
        $region18: #{tpu_custom_call.1} parent=11 // pred_check_branch
          %145 = sbr.rel (%p143) target = $region20
        $region19: #{tpu_custom_call.1} parent=11 // pred_region
          _
        $region20: #{tpu_custom_call.1} parent=11 // pred_fallthru
          _
      $region12: #{tpu_custom_call.1} parent=5 // pred_fallthru
        _
      %p146 = scmp.lt.s32.totalorder %s15, 2
      // Predicated region
      $region21: #{tpu_custom_call.1} parent=5 // pred_check
        %p147 = pneg %p146
      $region22: #{tpu_custom_call.1} parent=5 // pred_check_branch
        %149 = sbr.rel (%p147) target = $region24
      $region23: #{tpu_custom_call.1} parent=5 // pred_region
        // Predicated region
        $region25: #{tpu_custom_call.1} parent=23 // pred_check
          %p150 = pneg %p49
        $region26: #{tpu_custom_call.1} parent=23 // pred_check_branch
          %152 = sbr.rel (%p150) target = $region28
        $region27: #{tpu_custom_call.1} parent=23 // pred_region
          %s153 = sand.u32 %s39, 1
          %s154 = scalar_lea.sflag [#allocation3], %s153
          %s155 = sand.u32 %s39, 1
          %s156 = smul.addr %s155, 8
          %s157 = scalar_lea.vmem [#allocation2], %s156
          %s158 = smul.u32 2, %s23
          %s160 = ssub.s32 128, 128
          %161 = vsyncadd %s154, %s160
          %s162 = smul.addr %s22, 2
          %s163 = sadd.s32 %s158, %s162
          %s164 = smul.addr %s163, 64
          %s165 = scalar_lea.hbm %s0, %s164
          %s167 = sshll.u32 %s157, 4
          %s168 = int_to_ptr.vmem [resolvable:$true] %s167
          %170 = dma.hbm_to_vmem [thread:$0]  %s165, 128, %s168, %s154
        $region28: #{tpu_custom_call.1} parent=23 // pred_fallthru
          _
      $region24: #{tpu_custom_call.1} parent=5 // pred_fallthru
        _
      %p171 = scmp.le.s32.totalorder 1, %s15
      %p172 = scmp.lt.s32.totalorder %s15, 3
      %p173 = pnand %p171, %p172
      %p174 = pneg %p173
      // Predicated region
      $region29: #{tpu_custom_call.1} parent=5 // pred_check
        _
      $region30: #{tpu_custom_call.1} parent=5 // pred_check_branch
        %176 = sbr.rel (%p173) target = $region32
      $region31: #{tpu_custom_call.1} parent=5 // pred_region
        %s177 = ssub.s32 %s15, 1
        %s178 = sand.u32 %s42, 1
        %s179 = scalar_lea.sflag [#allocation3], %s178
        %s180 = sand.u32 %s42, 1
        %s181 = smul.addr %s180, 8
        %s182 = scalar_lea.vmem [#allocation2], %s181
        // Predicated region
        $region33: #{tpu_custom_call.1} parent=31 // pred_check
          %p183 = pneg %p55
        $region34: #{tpu_custom_call.1} parent=31 // pred_check_branch
          %185 = sbr.rel (%p183) target = $region36
        $region35: #{tpu_custom_call.1} parent=31 // pred_region
          %186 = dma.done %s179, 128
        $region36: #{tpu_custom_call.1} parent=31 // pred_fallthru
          _
        %s187 = sand.u32 %s42, 1
        %s188 = scalar_lea.sflag [#allocation3], %s187
        %s189 = sand.u32 %s42, 1
        %s190 = smul.addr %s189, 8
        %s191 = scalar_lea.vmem [#allocation2], %s190
        %p192 = pneg %p55
        %p193 = pneg %p52
        %p194 = pneg %p76
        %p195 = pneg %p73
        %p196 = pneg %p97
        %p197 = pneg %p94
        %p198 = pneg %p125
        %p199 = pneg %p122
        %s200 = sand.u32 %s112, 1
        %s201 = scalar_lea.sflag [#allocation4], %s200
        %s202 = sand.u32 %s112, 1
        %s203 = smul.addr %s202, 8
        %s204 = scalar_lea.vmem [#allocation5], %s203
        %s205 = smul.u32 2, %s25
        %s206 = smul.u32 2, %s25
        %v207 = vld [vmem:[%s182] sm:$0xff]
        %v208 = vld [vmem:[%s1] sm:$0xf]
        %v209 = vld [vmem:[%s2] sm:$0xf]
        %211 = vset.pattern.permute.xlu0 0
        %212 = vperm.xlu0 %211, %v208
        %v213 = vpop.permute.xlu0 %212
        %v216 = vlaneseq
        %v217 = vshrl.u32 %v216, 7
        %v218 = vsub.s32 0, %v217
        %v219 = vrot.slane %v207, %v218
        %v220 = vlaneseq
        %v221 = vshrl.u32 %v220, 7
        %v222 = vsub.s32 4, %v221
        %v223 = vrot.slane %v207, %v222
        %v226 = vlaneseq
        %v227 = vshrl.u32 %v226, 7
        %v228 = vsub.s32 0, %v227
        %v229 = vrot.slane %v219, %v228
        %v230 = vlaneseq
        %v231 = vshrl.u32 %v230, 7
        %v232 = vsub.s32 0, %v231
        %v233 = vrot.slane %v223, %v232
        %v234 = vmul.f32 %v213, %v229
        %v235 = vmul.f32 %v213, %v233
        %236 = vset.pattern.permute.xlu0 1
        %237 = vperm.xlu0 %236, %v208
        %v238 = vpop.permute.xlu0 %237
        %v240 = vlaneseq
        %v241 = vshrl.u32 %v240, 7
        %v242 = vsub.s32 1, %v241
        %v243 = vrot.slane %v207, %v242
        %v244 = vlaneseq
        %v245 = vshrl.u32 %v244, 7
        %v246 = vsub.s32 5, %v245
        %v247 = vrot.slane %v207, %v246
        %v250 = vlaneseq
        %v251 = vshrl.u32 %v250, 7
        %v252 = vsub.s32 1, %v251
        %v253 = vrot.slane %v243, %v252
        %v254 = vlaneseq
        %v255 = vshrl.u32 %v254, 7
        %v256 = vsub.s32 1, %v255
        %v257 = vrot.slane %v247, %v256
        %v258 = vmul.f32 %v238, %v253
        %v259 = vmul.f32 %v238, %v257
        %v260 = vadd.f32 %v234, %v258
        %v261 = vadd.f32 %v235, %v259
        %262 = vset.pattern.permute.xlu0 2
        %263 = vperm.xlu0 %262, %v208
        %v264 = vpop.permute.xlu0 %263
        %v266 = vlaneseq
        %v267 = vshrl.u32 %v266, 7
        %v268 = vsub.s32 2, %v267
        %v269 = vrot.slane %v207, %v268
        %v270 = vlaneseq
        %v271 = vshrl.u32 %v270, 7
        %v272 = vsub.s32 6, %v271
        %v273 = vrot.slane %v207, %v272
        %v276 = vlaneseq
        %v277 = vshrl.u32 %v276, 7
        %v278 = vsub.s32 2, %v277
        %v279 = vrot.slane %v269, %v278
        %v280 = vlaneseq
        %v281 = vshrl.u32 %v280, 7
        %v282 = vsub.s32 2, %v281
        %v283 = vrot.slane %v273, %v282
        %v284 = vmul.f32 %v264, %v279
        %v285 = vmul.f32 %v264, %v283
        %v286 = vadd.f32 %v260, %v284
        %v287 = vadd.f32 %v261, %v285
        %288 = vset.pattern.permute.xlu0 3
        %289 = vperm.xlu0 %288, %v208
        %v290 = vpop.permute.xlu0 %289
        %v292 = vlaneseq
        %v293 = vshrl.u32 %v292, 7
        %v294 = vsub.s32 3, %v293
        %v295 = vrot.slane %v207, %v294
        %v296 = vlaneseq
        %v297 = vshrl.u32 %v296, 7
        %v298 = vsub.s32 7, %v297
        %v299 = vrot.slane %v207, %v298
        %v302 = vlaneseq
        %v303 = vshrl.u32 %v302, 7
        %v304 = vsub.s32 3, %v303
        %v305 = vrot.slane %v295, %v304
        %v306 = vlaneseq
        %v307 = vshrl.u32 %v306, 7
        %v308 = vsub.s32 3, %v307
        %v309 = vrot.slane %v299, %v308
        %v310 = vmul.f32 %v290, %v305
        %v311 = vmul.f32 %v290, %v309
        %v312 = vadd.f32 %v286, %v310
        %v313 = vadd.f32 %v287, %v311
        %315 = vset.pattern.permute.xlu0 0
        %316 = vperm.xlu0 %315, %v209
        %v317 = vpop.permute.xlu0 %316
        %v319 = vadd.f32 %v312, %v317
        %v320 = vadd.f32 %v313, %v317
        %vm321 = vcmask 1043456
        %v322 = vsel %vm321, %v319, -inf
        %v323 = vrot.slane %v322, 4
        %v324 = vmax.f32 %v322, %v323
        %v325 = vrot.slane %v324, 2
        %v326 = vmax.f32 %v324, %v325
        %v327 = vrot.slane %v326, 1
        %v328 = vmax.f32 %v326, %v327
        %v329 = vsel %vm321, %v320, -inf
        %v330 = vrot.slane %v329, 4
        %v331 = vmax.f32 %v329, %v330
        %v332 = vrot.slane %v331, 2
        %v333 = vmax.f32 %v331, %v332
        %v334 = vrot.slane %v333, 1
        %v335 = vmax.f32 %v333, %v334
        %v336 = vsub.f32 %v319, %v328
        %v337 = vsub.f32 %v320, %v335
        %v338 = vmul.f32 %v336, 1.442695
        %v339 = vpow.pop %v338
        %v340 = vmul.f32 %v337, 1.442695
        %v341 = vpow.pop %v340
        %v342 = vsel %vm321, %v339, 0.0
        %v343 = vrot.slane %v342, 4
        %v344 = vadd.f32 %v342, %v343
        %v345 = vrot.slane %v344, 2
        %v346 = vadd.f32 %v344, %v345
        %v347 = vrot.slane %v346, 1
        %v348 = vadd.f32 %v346, %v347
        %v349 = vsel %vm321, %v341, 0.0
        %v350 = vrot.slane %v349, 4
        %v351 = vadd.f32 %v349, %v350
        %v352 = vrot.slane %v351, 2
        %v353 = vadd.f32 %v351, %v352
        %v354 = vrot.slane %v353, 1
        %v355 = vadd.f32 %v353, %v354
        %v356 = vrcp.pop %v348
        %v357 = vrcp.pop %v355
        %v358 = vmul.f32 %v339, %v356
        %v359 = vmul.f32 %v341, %v357
        %v362 = vcombine.low %v358, %v359
        %364 = vst [vmem:[%s204] sm:$0xff] %v362
        %s365 = sand.u32 %s112, 1
        %s366 = scalar_lea.sflag [#allocation4], %s365
        %s367 = sand.u32 %s112, 1
        %s368 = smul.addr %s367, 8
        %s369 = scalar_lea.vmem [#allocation5], %s368
        // Predicated region
        $region37: #{tpu_custom_call.1} parent=31 // pred_check
          %p370 = pneg %p122
        $region38: #{tpu_custom_call.1} parent=31 // pred_check_branch
          %372 = sbr.rel (%p370) target = $region40
        $region39: #{tpu_custom_call.1} parent=31 // pred_region
          %s373 = smul.u32 2, %s25
          %s375 = ssub.s32 128, 128
          %376 = vsyncadd %s366, %s375
          %s377 = smul.addr %s24, 2
          %s378 = sadd.s32 %s373, %s377
          %s379 = smul.addr %s378, 64
          %s380 = scalar_lea.hbm %s3, %s379
          %s382 = sshll.u32 %s369, 4
          %s383 = int_to_ptr.vmem [resolvable:$true] %s382
          %385 = dma.vmem_to_hbm [thread:$0]  %s383, 128, %s380, %s366
        $region40: #{tpu_custom_call.1} parent=31 // pred_fallthru
          _
      $region32: #{tpu_custom_call.1} parent=5 // pred_fallthru
        _
      %p386 = scmp.le.s32.totalorder 2, %s15
      // Predicated region
      $region41: #{tpu_custom_call.1} parent=5 // pred_check
        %p387 = pneg %p386
      $region42: #{tpu_custom_call.1} parent=5 // pred_check_branch
        %389 = sbr.rel (%p387) target = $region44
      $region43: #{tpu_custom_call.1} parent=5 // pred_region
        %s390 = ssub.s32 %s15, 2
        // Predicated region
        $region45: #{tpu_custom_call.1} parent=43 // pred_check
          %p391 = pneg %p128
        $region46: #{tpu_custom_call.1} parent=43 // pred_check_branch
          %393 = sbr.rel (%p391) target = $region48
        $region47: #{tpu_custom_call.1} parent=43 // pred_region
          %s394 = sand.u32 %s113, 1
          %s395 = scalar_lea.sflag [#allocation4], %s394
          %s396 = sand.u32 %s113, 1
          %s397 = smul.addr %s396, 8
          %s398 = scalar_lea.vmem [#allocation5], %s397
          %399 = dma.done %s395, 128
        $region48: #{tpu_custom_call.1} parent=43 // pred_fallthru
          _
      $region44: #{tpu_custom_call.1} parent=5 // pred_fallthru
        _
    $region6: #{tpu_custom_call.1} parent=1 // loop_footer
      %s19 = sadd.s32 1, %s15
    $region7: #{tpu_custom_call.1} parent=1 // loop_footer_branch
      %14 = sbr.rel target = $region3
    $region8: #{tpu_custom_call.1} parent=1 // loop_exit
      _
    %400 = vsyncpa [#allocation3], 1
    %s401 = scalar_lea.sflag [#allocation3], 1
    %402 = vsyncpa %s401, 1
    %403 = vsyncpa [#allocation4], 1
    %s404 = scalar_lea.sflag [#allocation4], 1
    %405 = vsyncpa %s404, 1

</llo_original>
